<compile_context>
chip_gen: v7x
topology: tpu7x:2x2x1
jax: 0.10.0
libtpu: 0.0.40
codegen_flags: <defaults>
</compile_context>

<pallas_src>
import jax
import jax.numpy as jnp
from jax.experimental import pallas as pl
from jax.experimental.pallas import tpu as pltpu


def _round_up(x, m):
    return (x + m - 1) // m * m


def _pad_axis(a, axis, new_size):
    pad = new_size - a.shape[axis]
    if pad <= 0:
        return a
    widths = [(0, 0)] * a.ndim
    widths[axis] = (0, pad)
    return jnp.pad(a, widths)  # zero padding keeps the math exact


# --------------------------------------------------------------------------
# Kernel
# --------------------------------------------------------------------------
def hypernet_kernel(x_ref, w1_ref, b1_ref, w2_ref, b2_ref, out_ref):
    # fc1 (tiny: B x in @ in x hidden), recomputed per output tile. Its cost
    # is negligible versus streaming the W2 tile from HBM and it keeps the N
    # axis fully parallel / megacore-shardable.
    h = jnp.dot(x_ref[...], w1_ref[...], preferred_element_type=jnp.float32)
    h = jnp.maximum(h + b1_ref[...], 0.0)
    # fc2 tile: bf16 weights streamed from HBM, f32 accumulation on the MXU.
    y = jnp.dot(h.astype(w2_ref.dtype), w2_ref[...],
                preferred_element_type=jnp.float32)
    out_ref[...] = (y + b2_ref[...]).astype(out_ref.dtype)


# --------------------------------------------------------------------------
# Tile-size selection
# --------------------------------------------------------------------------
def _choose_tn(hid_p, target, b_p, w2_itemsize, requested_tn=None):
    tgt_128 = _round_up(target, 128)
    if requested_tn is None:
        # ~2 MiB W2 tile so per-tile DMA time dwarfs the ~0.35 us/step grid
        # overhead (good on v5e's 0.8 TB/s through v7x's 3.2 TB/s).
        tn = _round_up(max(1, (2 << 20) // max(1, hid_p * w2_itemsize)), 128)
    else:
        tn = _round_up(requested_tn, 128)
    tn = min(tn, tgt_128)
    # Keep >= ~8 grid steps for large targets: both v7x TensorCores get
    # several tiles and each core still double-buffers.
    if tgt_128 >= 8 * 128:
        tn = min(tn, max(128, (tgt_128 // 8) // 128 * 128))
    # VMEM cap (v7x has only 64 MiB physical): double-buffered W2 + out + b2
    # columns stay under ~40 MiB, leaving room for resident x/W1/b1.
    per_col_bytes = 2 * (hid_p * w2_itemsize + b_p * 4 + 4)
    tn_cap = max(128, ((40 << 20) // per_col_bytes) // 128 * 128)
    return min(tn, tn_cap)


# --------------------------------------------------------------------------
# One-time weight preparation (pad + cast OUTSIDE the per-call forward)
# --------------------------------------------------------------------------
def prepare_hypernet_params(w1, b1, w2, b2, *, batch, tn=None):
    """Pad / cast the hypernetwork weights once.

    w1: (in, hidden)  b1: (1, hidden)  w2: (hidden, target)  b2: (1, target)
    """
    if b1.ndim == 1:
        b1 = b1[None, :]
    if b2.ndim == 1:
        b2 = b2[None, :]
    hidden, target = w2.shape

    # Stream W2 in bf16 (dominant HBM operand); accumulate in f32 on the MXU.
    # TODO(synk): int8 (v5e/v6e) or fp8 (v7x) W2 + per-column scales would
    # halve the dominant HBM stream again if the accuracy budget allows.
    w2 = w2.astype(jnp.bfloat16)

    b_p = _round_up(batch, 8)             # f32 sublane count
    hid_p = _round_up(hidden, 16)         # bf16 sublane only; NOT 128
    tn = _choose_tn(hid_p, target, b_p, jnp.dtype(jnp.bfloat16).itemsize, tn)
    tgt_p = _round_up(target, tn)

    params = dict(
        w1=_pad_axis(w1.astype(jnp.float32), 1, hid_p),
        b1=_pad_axis(b1.astype(jnp.float32), 1, hid_p),
        w2=_pad_axis(_pad_axis(w2, 0, hid_p), 1, tgt_p),
        b2=_pad_axis(b2.astype(jnp.float32), 1, tgt_p),
    )
    meta = dict(target=target, b_p=b_p, hid_p=hid_p, tn=tn, tgt_p=tgt_p)
    return params, meta


# --------------------------------------------------------------------------
# Forward pass (only the tiny preference pad + output slice happen per call)
# --------------------------------------------------------------------------
def hypernetwork_forward(preference, params, meta):
    B, in_dim = preference.shape
    b_p, hid_p = meta["b_p"], meta["hid_p"]
    tn, tgt_p, target = meta["tn"], meta["tgt_p"], meta["target"]
    assert B <= b_p, "batch larger than the padded batch used at prepare time"

    x_p = _pad_axis(preference.astype(jnp.float32), 0, b_p)
    w1, b1, w2, b2 = params["w1"], params["b1"], params["w2"], params["b2"]

    grid = (tgt_p // tn,)

    cost = pl.CostEstimate(
        flops=grid[0] * (2 * b_p * in_dim * hid_p)        # fc1 recompute
              + 2 * b_p * hid_p * tgt_p,                  # fc2
        transcendentals=0,
        bytes_accessed=(x_p.size * 4 + w1.size * 4 + b1.size * 4
                        + w2.size * w2.dtype.itemsize + b2.size * 4
                        + b_p * tgt_p * 4),
    )

    out_p = pl.pallas_call(
        hypernet_kernel,
        out_shape=jax.ShapeDtypeStruct((b_p, tgt_p), jnp.float32),
        grid_spec=pltpu.PrefetchScalarGridSpec(
            num_scalar_prefetch=0,
            grid=grid,
            in_specs=[
                # Constant block index -> VMEM-resident across the grid.
                pl.BlockSpec((b_p, in_dim), lambda j: (0, 0)),
                pl.BlockSpec((in_dim, hid_p), lambda j: (0, 0)),
                pl.BlockSpec((1, hid_p), lambda j: (0, 0)),
                # Streamed, N-tiled operands (auto double-buffered).
                pl.BlockSpec((hid_p, tn), lambda j: (0, j)),
                pl.BlockSpec((1, tn), lambda j: (0, j)),
            ],
            out_specs=pl.BlockSpec((b_p, tn), lambda j: (0, j)),
        ),
        compiler_params=pltpu.CompilerParams(
            # Independent output tiles -> megacore-shardable on v7x.
            dimension_semantics=("parallel",),
            # Safe on every generation (v7x physical = 64 MiB); well above the
            # double-buffered working set enforced by _choose_tn.
            vmem_limit_bytes=48 * 1024 * 1024,
        ),
        cost_estimate=cost,
    )(x_p, w1, b1, w2, b2)

    return out_p[:B, :target]


# --------------------------------------------------------------------------
# Init (nn.Linear-style U(-1/sqrt(fan_in), 1/sqrt(fan_in)))
# --------------------------------------------------------------------------
def init_params(key, input_dim, hidden_dim, target_param_count):
    k1, k2, k3, k4 = jax.random.split(key, 4)
    bound1 = 1.0 / jnp.sqrt(jnp.float32(input_dim))
    bound2 = 1.0 / jnp.sqrt(jnp.float32(hidden_dim))
    w1 = jax.random.uniform(k1, (input_dim, hidden_dim), jnp.float32, -bound1, bound1)
    b1 = jax.random.uniform(k2, (1, hidden_dim), jnp.float32, -bound1, bound1)
    w2 = jax.random.uniform(k3, (hidden_dim, target_param_count), jnp.float32,
                            -bound2, bound2)
    b2 = jax.random.uniform(k4, (1, target_param_count), jnp.float32, -bound2, bound2)
    return w1, b1, w2, b2


if __name__ == "__main__":
    input_dim = 4            # preference vector size (number of objectives)
    hidden_dim = 32
    target_param_count = 64  # small smoke-test size
    batch = 2

    key = jax.random.PRNGKey(0)
    kx, kp = jax.random.split(key)
    preference = jax.random.uniform(kx, (batch, input_dim), jnp.float32)
    w1, b1, w2, b2 = init_params(kp, input_dim, hidden_dim, target_param_count)

    # One-time weight preparation (padding + bf16 cast happen here, not per call).
    params, meta = prepare_hypernet_params(w1, b1, w2, b2, batch=batch)

    out = hypernetwork_forward(preference, params, meta)
    out = jax.block_until_ready(out)

    # Pure-JAX reference with the same dtypes/math as the kernel.
    h_ref = jnp.maximum(preference @ w1 + b1, 0.0)
    ref = jnp.dot(h_ref.astype(jnp.bfloat16), w2.astype(jnp.bfloat16),
                  preferred_element_type=jnp.float32) + b2

    assert out.shape == (batch, target_param_count)
    assert out.dtype == jnp.float32
    assert jnp.allclose(out, ref, atol=1e-3, rtol=1e-3), \
        float(jnp.max(jnp.abs(out - ref)))

    print("KERNEL_OK")
</pallas_src>

<mosaic_0001>
module attributes {stable_mosaic.version = 11 : i64} {
  func.func @hypernet_kernel(%arg0: i32, %arg1: memref<8x4xf32, #tpu.memory_space<vmem>>, %arg2: memref<4x32xf32, #tpu.memory_space<vmem>>, %arg3: memref<1x32xf32, #tpu.memory_space<vmem>>, %arg4: memref<32x128xbf16, #tpu.memory_space<vmem>>, %arg5: memref<1x128xf32, #tpu.memory_space<vmem>>, %arg6: memref<8x128xf32, #tpu.memory_space<vmem>>) attributes {dimension_semantics = [#tpu.dimension_semantics<parallel>], iteration_bounds = array<i64: 1>, scalar_prefetch = 0 : i64, scratch_operands = 0 : i64, tpu.core_type = #tpu.core_type<tc>, window_params = [{pipeline_mode = #tpu.pipeline_mode<synchronous>, transform_indices = @transform_0, window_bounds = array<i64: 8, 4>}, {pipeline_mode = #tpu.pipeline_mode<synchronous>, transform_indices = @transform_1, window_bounds = array<i64: 4, 32>}, {pipeline_mode = #tpu.pipeline_mode<synchronous>, transform_indices = @transform_2, window_bounds = array<i64: 1, 32>}, {transform_indices = @transform_3, window_bounds = array<i64: 32, 128>}, {transform_indices = @transform_4, window_bounds = array<i64: 1, 128>}, {transform_indices = @transform_5, window_bounds = array<i64: 8, 128>}]} {
    %c0 = arith.constant 0 : index
    %c0_0 = arith.constant 0 : index
    %0 = vector.load %arg1[%c0, %c0_0] : memref<8x4xf32, #tpu.memory_space<vmem>>, vector<8x4xf32>
    %c0_1 = arith.constant 0 : index
    %c0_2 = arith.constant 0 : index
    %1 = vector.load %arg2[%c0_1, %c0_2] : memref<4x32xf32, #tpu.memory_space<vmem>>, vector<4x32xf32>
    %cst = arith.constant dense<0.000000e+00> : vector<8x32xf32>
    %2 = tpu.matmul %0, %1, %cst {dimension_numbers = #tpu.dot_dimension_numbers<[1], [0], [0], [1], [0, 0, 1, 1], [], []>} : vector<8x4xf32>, vector<4x32xf32>, vector<8x32xf32> -> vector<8x32xf32>
    %c0_3 = arith.constant 0 : index
    %c0_4 = arith.constant 0 : index
    %3 = vector.load %arg3[%c0_3, %c0_4] : memref<1x32xf32, #tpu.memory_space<vmem>>, vector<1x32xf32>
    %4 = vector.broadcast %3 : vector<1x32xf32> to vector<8x32xf32>
    %5 = arith.addf %2, %4 : vector<8x32xf32>
    %cst_5 = arith.constant 0.000000e+00 : f32
    %6 = vector.broadcast %cst_5 : f32 to vector<8x32xf32>
    %7 = arith.maximumf %5, %6 : vector<8x32xf32>
    %8 = arith.truncf %7 : vector<8x32xf32> to vector<8x32xbf16>
    %c0_6 = arith.constant 0 : index
    %c0_7 = arith.constant 0 : index
    %9 = vector.load %arg4[%c0_6, %c0_7] : memref<32x128xbf16, #tpu.memory_space<vmem>>, vector<32x128xbf16>
    %cst_8 = arith.constant dense<0.000000e+00> : vector<8x128xf32>
    %10 = tpu.matmul %8, %9, %cst_8 {dimension_numbers = #tpu.dot_dimension_numbers<[1], [0], [0], [1], [0, 0, 1, 1], [], []>} : vector<8x32xbf16>, vector<32x128xbf16>, vector<8x128xf32> -> vector<8x128xf32>
    %c0_9 = arith.constant 0 : index
    %c0_10 = arith.constant 0 : index
    %11 = vector.load %arg5[%c0_9, %c0_10] : memref<1x128xf32, #tpu.memory_space<vmem>>, vector<1x128xf32>
    %12 = vector.broadcast %11 : vector<1x128xf32> to vector<8x128xf32>
    %13 = arith.addf %10, %12 : vector<8x128xf32>
    %c0_11 = arith.constant 0 : index
    %c0_12 = arith.constant 0 : index
    %14 = vector.load %arg6[%c0_11, %c0_12] : memref<8x128xf32, #tpu.memory_space<vmem>>, vector<8x128xf32>
    tpu.vector_store %arg6[%c0_11, %c0_12], %13 {strides = array<i32>} : memref<8x128xf32, #tpu.memory_space<vmem>>, vector<8x128xf32>,
    return
  }
  func.func @transform_0(%arg0: i32) -> (i32, i32) {
    %c0_i32 = arith.constant 0 : i32
    %c0_i32_0 = arith.constant 0 : i32
    %c0_i32_1 = arith.constant 0 : i32
    return %c0_i32, %c0_i32_0 : i32, i32
  }
  func.func @transform_1(%arg0: i32) -> (i32, i32) {
    %c0_i32 = arith.constant 0 : i32
    %c0_i32_0 = arith.constant 0 : i32
    %c0_i32_1 = arith.constant 0 : i32
    return %c0_i32, %c0_i32_0 : i32, i32
  }
  func.func @transform_2(%arg0: i32) -> (i32, i32) {
    %c0_i32 = arith.constant 0 : i32
    %c0_i32_0 = arith.constant 0 : i32
    %c0_i32_1 = arith.constant 0 : i32
    return %c0_i32, %c0_i32_0 : i32, i32
  }
  func.func @transform_3(%arg0: i32) -> (i32, i32) {
    %c0_i32 = arith.constant 0 : i32
    %c0_i32_0 = arith.constant 0 : i32
    return %c0_i32, %arg0 : i32, i32
  }
  func.func @transform_4(%arg0: i32) -> (i32, i32) {
    %c0_i32 = arith.constant 0 : i32
    %c0_i32_0 = arith.constant 0 : i32
    return %c0_i32, %arg0 : i32, i32
  }
  func.func @transform_5(%arg0: i32) -> (i32, i32) {
    %c0_i32 = arith.constant 0 : i32
    %c0_i32_0 = arith.constant 0 : i32
    return %c0_i32, %arg0 : i32, i32
  }
}

</mosaic_0001>

<llo_original>
// kernel: tpu_custom_call.1
$region0: #{tpu_custom_call.1}
  #allocation0 [shape = 'u32[]', space=smem, size = 0x4, offset = 0x4, fixed_abs, tag = 'smem constant byte address 0x4 - core index']
  #allocation1 [shape = 'u32[144,128]{1,0:T(1,128)}', space=vmem, size = 0x12000, scoped, tag = 'internal scratch']
  %s0 = inlined_call_operand.vmem [shape: f32[8,4], index: 0, kind: input, shape index: {}]
  %s1 = inlined_call_operand.vmem [shape: f32[4,32], index: 1, kind: input, shape index: {}]
  %s2 = inlined_call_operand.vmem [shape: f32[1,32], index: 2, kind: input, shape index: {}]
  %s3 = inlined_call_operand.vmem [shape: bf16[32,128], index: 3, kind: input, shape index: {}]
  %s4 = inlined_call_operand.vmem [shape: f32[1,128], index: 4, kind: input, shape index: {}]
  %s5 = inlined_call_operand.hbm [shape: f32[8,128], index: 5, kind: output, shape index: {}]
  %s6 = sld [smem:[#allocation0]]
  $region30: #{tpu_custom_call.1} parent=0
    _
  %s8 = ssub.s32 1, %s6
  %s9 = scalar_select 0, %s8, %s6
  $region1: #{tpu_custom_call.1} parent=0
    #allocation2 [shape = 'u8[4096]{0}', space=vmem, size = 0x1000, scoped, tag = 'output window, operand 0, single buffered']
    #allocation3 [shape = 's32[1]{0}', space=sflag, size = 0x4, scoped, tag = 'scoped memory for tpu_custom_call.1']
    %10 = vsyncpa [#allocation3], 0
    // Predicated region
    $region2: #{tpu_custom_call.1} parent=1 // pred_check
      _
    $region3: #{tpu_custom_call.1} parent=1 // pred_check_branch
      %12 = sbr.rel (0) target = $region5
    $region4: #{tpu_custom_call.1} parent=1 // pred_region
      _
    $region5: #{tpu_custom_call.1} parent=1 // pred_fallthru
      _
    // Predicated region
    $region6: #{tpu_custom_call.1} parent=1 // pred_check
      _
    $region7: #{tpu_custom_call.1} parent=1 // pred_check_branch
      %14 = sbr.rel (0) target = $region9
    $region8: #{tpu_custom_call.1} parent=1 // pred_region
      _
    $region9: #{tpu_custom_call.1} parent=1 // pred_fallthru
      _
    // Predicated region
    $region10: #{tpu_custom_call.1} parent=1 // pred_check
      _
    $region11: #{tpu_custom_call.1} parent=1 // pred_check_branch
      %16 = sbr.rel (0) target = $region13
    $region12: #{tpu_custom_call.1} parent=1 // pred_region
      _
    $region13: #{tpu_custom_call.1} parent=1 // pred_fallthru
      _
    // Predicated region
    $region14: #{tpu_custom_call.1} parent=1 // pred_check
      _
    $region15: #{tpu_custom_call.1} parent=1 // pred_check_branch
      %18 = sbr.rel (0) target = $region17
    $region16: #{tpu_custom_call.1} parent=1 // pred_region
      _
    $region17: #{tpu_custom_call.1} parent=1 // pred_fallthru
      _
    // Predicated region
    $region18: #{tpu_custom_call.1} parent=1 // pred_check
      _
    $region19: #{tpu_custom_call.1} parent=1 // pred_check_branch
      %20 = sbr.rel (0) target = $region21
    $region20: #{tpu_custom_call.1} parent=1 // pred_region
      _
    $region21: #{tpu_custom_call.1} parent=1 // pred_fallthru
      _
    %v22 = vld [vmem:[%s0] sm:$0xff]
    %v23 = vld [vmem:[%s1] sm:$0xf]
    %v24 = vld [vmem:[%s2] sm:$0x1]
    %v26 = vlaneseq
    %v27 = vshrl.u32 %v26, 7
    %v28 = vsub.s32 0, %v27
    %v29 = vrot.slane %v24, %v28
    %vm31 = vcmask 31744
    %v33 = vsel %vm31, %v22, 0
    %vm35 = vcmask 1043456
    %v37 = vsel %vm35, %v23, 0
    %39 = vmatprep.subr.mxu0 0.0
    %40 = vmatpush1.msra.mxu0 %v37
    %41 = vmatprep.subr.mxu0 0.0
    %42 = vmatpush1.msra.mxu0 0.0
    %43 = vmatprep.subr.mxu0 0.0
    %44 = vmatpush1.msra.mxu0 0.0
    %45 = vmatprep.subr.mxu0 0.0
    %46 = vmatpush1.msra.mxu0 0.0
    %47 = vmatprep.subr.mxu0 0.0
    %48 = vmatpush1.msra.mxu0 0.0
    %49 = vmatprep.subr.mxu0 0.0
    %50 = vmatpush1.msra.mxu0 0.0
    %51 = vmatprep.subr.mxu0 0.0
    %52 = vmatpush1.msra.mxu0 0.0
    %53 = vmatprep.subr.mxu0 0.0
    %54 = vmatpush1.msra.mxu0 0.0
    %55 = vmatprep.subr.mxu0 0.0
    %56 = vmatpush1.msra.mxu0 0.0
    %57 = vmatprep.subr.mxu0 0.0
    %58 = vmatpush1.msra.mxu0 0.0
    %59 = vmatprep.subr.mxu0 0.0
    %60 = vmatpush1.msra.mxu0 0.0
    %61 = vmatprep.subr.mxu0 0.0
    %62 = vmatpush1.msra.mxu0 0.0
    %63 = vmatprep.subr.mxu0 0.0
    %64 = vmatpush1.msra.mxu0 0.0
    %65 = vmatprep.subr.mxu0 0.0
    %66 = vmatpush1.msra.mxu0 0.0
    %67 = vmatprep.subr.mxu0 0.0
    %68 = vmatpush1.msra.mxu0 0.0
    %69 = vmatprep.subr.mxu0 0.0
    %70 = vmatpush1.msra.mxu0 0.0
    %71 = vmatprep.subr.mxu0 0.0
    %72 = vmatpush1.msra.mxu0 0.0
    %73 = vmatprep.subr.mxu0 0.0
    %74 = vmatpush1.msra.mxu0 0.0
    %75 = vmatprep.subr.mxu0 0.0
    %76 = vmatpush1.msra.mxu0 0.0
    %77 = vmatprep.subr.mxu0 0.0
    %78 = vmatpush1.msra.mxu0 0.0
    %79 = vmatprep.subr.mxu0 0.0
    %80 = vmatpush1.msra.mxu0 0.0
    %81 = vmatprep.subr.mxu0 0.0
    %82 = vmatpush1.msra.mxu0 0.0
    %83 = vmatprep.subr.mxu0 0.0
    %84 = vmatpush1.msra.mxu0 0.0
    %85 = vmatprep.subr.mxu0 0.0
    %86 = vmatpush1.msra.mxu0 0.0
    %87 = vmatprep.subr.mxu0 0.0
    %88 = vmatpush1.msra.mxu0 0.0
    %89 = vmatprep.subr.mxu0 0.0
    %90 = vmatpush1.msra.mxu0 0.0
    %91 = vmatprep.subr.mxu0 0.0
    %92 = vmatpush1.msra.mxu0 0.0
    %93 = vmatprep.subr.mxu0 0.0
    %94 = vmatpush1.msra.mxu0 0.0
    %95 = vmatprep.subr.mxu0 0.0
    %96 = vmatpush1.msra.mxu0 0.0
    %97 = vmatprep.subr.mxu0 0.0
    %98 = vmatpush1.msra.mxu0 0.0
    %99 = vmatprep.subr.mxu0 0.0
    %100 = vmatpush1.msra.mxu0 0.0
    %101 = vmatprep.subr.mxu0 0.0
    %102 = vmatpush1.msra.mxu0 0.0
    %103 = vmatprep.mubr.f32.mxu0 0.0
    %104 = vmatmul.mubr.f32.gmra.mrb[0].mxu0 %v33
    %v105 = vpop.f32.mrb[0].mxu0
    %v106 = vadd.f32 %v29, %v105
    %v107 = vpop.f32.mrb[0].mxu0
    %108 = vdwg.mxu0
    %v109 = vmax.f32 %v106, 0.0
    %v110 = vpack.c.bf16 %v109, %v109
    %v111 = vld [vmem:[%s3] sm:$0xf]
    %v112 = vld [vmem:[%s3 + $0x4] sm:$0xf]
    %v113 = vld [vmem:[%s3 + $0x8] sm:$0xf]
    %v114 = vld [vmem:[%s3 + $0xc] sm:$0xf]
    %v115 = vld [vmem:[%s4] sm:$0x1]
    %v117 = vlaneseq
    %v118 = vshrl.u32 %v117, 7
    %v119 = vsub.s32 0, %v118
    %v120 = vrot.slane %v115, %v119
    %v126 = vunpack.c.l.b16 %v111
    %v127 = vunpack.c.l.b16 %v112
    %v128 = vunpack.c.l.b16 %v113
    %v129 = vunpack.c.l.b16 %v114
    %v130 = vpack.c.b16 %v127, %v126
    %v131 = vpack.c.b16 %v129, %v128
    %vm134 = vcmask 261120
    %v136 = vsel %vm134, %v110, 0
    %138 = vmatprep.subr.bf16.mxu0 0
    %139 = vmatpush1.bf16.msra.mxu0 %v130
    %140 = vmatprep.subr.bf16.mxu0 0
    %141 = vmatpush1.bf16.msra.mxu0 %v131
    %142 = vmatprep.subr.bf16.mxu0 0
    %143 = vmatpush1.bf16.msra.mxu0 0
    %144 = vmatprep.subr.bf16.mxu0 0
    %145 = vmatpush1.bf16.msra.mxu0 0
    %146 = vmatprep.subr.bf16.mxu0 0
    %147 = vmatpush1.bf16.msra.mxu0 0
    %148 = vmatprep.subr.bf16.mxu0 0
    %149 = vmatpush1.bf16.msra.mxu0 0
    %150 = vmatprep.subr.bf16.mxu0 0
    %151 = vmatpush1.bf16.msra.mxu0 0
    %152 = vmatprep.subr.bf16.mxu0 0
    %153 = vmatpush1.bf16.msra.mxu0 0
    %154 = vmatprep.subr.bf16.mxu0 0
    %155 = vmatpush1.bf16.msra.mxu0 0
    %156 = vmatprep.subr.bf16.mxu0 0
    %157 = vmatpush1.bf16.msra.mxu0 0
    %158 = vmatprep.subr.bf16.mxu0 0
    %159 = vmatpush1.bf16.msra.mxu0 0
    %160 = vmatprep.subr.bf16.mxu0 0
    %161 = vmatpush1.bf16.msra.mxu0 0
    %162 = vmatprep.subr.bf16.mxu0 0
    %163 = vmatpush1.bf16.msra.mxu0 0
    %164 = vmatprep.subr.bf16.mxu0 0
    %165 = vmatpush1.bf16.msra.mxu0 0
    %166 = vmatprep.subr.bf16.mxu0 0
    %167 = vmatpush1.bf16.msra.mxu0 0
    %168 = vmatprep.subr.bf16.mxu0 0
    %169 = vmatpush1.bf16.msra.mxu0 0
    %170 = vmatprep.mubr.bf16.mxu0 0
    %171 = vmatmul.mubr.bf16.gmra.mrb[0].mxu0 %v136
    %v172 = vpop.f32.mrb[0].mxu0
    %v173 = vadd.f32 %v120, %v172
    %v174 = vpop.f32.mrb[0].mxu0
    %v175 = vpop.f32.mrb[0].mxu0
    %v176 = vpop.f32.mrb[0].mxu0
    %177 = vdwg.mxu0
    %178 = vst [vmem:[#allocation2] sm:$0xff] %v173
    // Predicated region
    $region22: #{tpu_custom_call.1} parent=1 // pred_check
      _
    $region23: #{tpu_custom_call.1} parent=1 // pred_check_branch
      %180 = sbr.rel (0) target = $region25
    $region24: #{tpu_custom_call.1} parent=1 // pred_region
      %s182 = ssub.s32 128, 128
      %183 = vsyncadd [#allocation3], %s182
      %s185 = sshll.u32 [#allocation2], 4
      %s186 = int_to_ptr.vmem [resolvable:$true] %s185
      %188 = dma.vmem_to_hbm [thread:$0]  %s186, 128, %s5, [#allocation3]
    $region25: #{tpu_custom_call.1} parent=1 // pred_fallthru
      _
    // Predicated region
    $region26: #{tpu_custom_call.1} parent=1 // pred_check
      _
    $region27: #{tpu_custom_call.1} parent=1 // pred_check_branch
      %190 = sbr.rel (0) target = $region29
    $region28: #{tpu_custom_call.1} parent=1 // pred_region
      %191 = dma.done [#allocation3], 128
    $region29: #{tpu_custom_call.1} parent=1 // pred_fallthru
      _
    %192 = vsyncpa [#allocation3], 1

</llo_original>
